<compile_context>
chip_gen: v7x
topology: tpu7x:2x2x1
jax: 0.10.0
libtpu: 0.0.40
codegen_flags: <defaults>
</compile_context>

<pallas_src>
import jax
import jax.numpy as jnp
from jax.experimental import pallas as pl
from jax.experimental.pallas import tpu as pltpu


def _link_predictor_kernel(z_ref, keep_ref, w_hid_ref, b_hid_ref,
                           w_fin_ref, b_fin_ref, out_ref):
    f32 = jnp.float32
    # Fused dropout (pre-scaled keep mask) on the concatenated [z_src | z_dst] slab.
    z = z_ref[...] * keep_ref[...]                                         # [tB, 2C]
    # Fused lin_src + lin_dst: one [tB, 2C] @ [2C, C] MXU pass, f32 accumulate.
    h = jnp.dot(z, w_hid_ref[...], preferred_element_type=f32) + b_hid_ref[...]
    h = jnp.tanh(h)                                                        # EUP
    # Final projection to a single logit per row.
    out = jnp.dot(h, w_fin_ref[...], preferred_element_type=f32) + b_fin_ref[...]
    out_ref[...] = out.astype(out_ref.dtype)                               # [tB, 1]


def link_predictor(params, z_src, z_dst, keep_src, keep_dst, *, tile_b=None):
    B, C = z_src.shape
    assert z_dst.shape == (B, C)

    # Wrapper-side layout plumbing: one lane-dense input slab + fused weights.
    z_cat = jnp.concatenate([z_src, z_dst], axis=-1)                       # [B, 2C]
    keep_cat = jnp.concatenate([keep_src, keep_dst], axis=-1)              # [B, 2C]
    w_hid = jnp.concatenate([params["w_src"], params["w_dst"]], axis=0)    # [2C, C]
    b_hid = (params["b_src"] + params["b_dst"]).reshape(1, C)              # [1, C]
    w_fin = params["w_fin"].reshape(C, 1)                                  # [C, 1]
    b_fin = params["b_fin"].reshape(1, 1)                                  # [1, 1]

    if tile_b is None:
        tile_b = B
    assert B % tile_b == 0 and (tile_b == B or tile_b % 8 == 0)
    grid = (B // tile_b,)

    itemsize = jnp.dtype(z_src.dtype).itemsize
    cost = pl.CostEstimate(
        flops=2 * B * (2 * C) * C + 2 * B * C + 4 * B * C,
        transcendentals=B * C,                                             # tanh
        bytes_accessed=(z_cat.size + keep_cat.size + w_hid.size + b_hid.size
                        + w_fin.size + b_fin.size + B) * itemsize,
    )

    return pl.pallas_call(
        _link_predictor_kernel,
        out_shape=jax.ShapeDtypeStruct((B, 1), z_src.dtype),
        grid_spec=pltpu.PrefetchScalarGridSpec(
            num_scalar_prefetch=0,
            grid=grid,
            in_specs=[
                pl.BlockSpec((tile_b, 2 * C), lambda i: (i, 0)),   # z slab
                pl.BlockSpec((tile_b, 2 * C), lambda i: (i, 0)),   # keep mask
                pl.BlockSpec((2 * C, C), lambda i: (0, 0)),        # fused W (resident)
                pl.BlockSpec((1, C), lambda i: (0, 0)),            # fused bias
                pl.BlockSpec((C, 1), lambda i: (0, 0)),            # final W
                pl.BlockSpec((1, 1), lambda i: (0, 0)),            # final bias
            ],
            out_specs=pl.BlockSpec((tile_b, 1), lambda i: (i, 0)),
        ),
        compiler_params=pltpu.CompilerParams(
            dimension_semantics=("parallel",)),                    # megacore on v7x
        cost_estimate=cost,
    )(z_cat, keep_cat, w_hid, b_hid, w_fin, b_fin)


def _reference(params, z_src, z_dst, keep_src, keep_dst):
    zs = z_src * keep_src
    zd = z_dst * keep_dst
    h = zs @ params["w_src"] + params["b_src"] + zd @ params["w_dst"] + params["b_dst"]
    h = jnp.tanh(h)
    return h @ params["w_fin"].reshape(-1, 1) + params["b_fin"].reshape(1, 1)


if __name__ == "__main__":
    key = jax.random.PRNGKey(0)
    B, C = 64, 32                      # batch of (src, dst) pairs, in_channels
    dropout_p = 0.1
    tile_b = 32                        # two batch tiles -> grid=(2,), "parallel"

    keys = jax.random.split(key, 10)
    z_src = jax.random.normal(keys[0], (B, C), jnp.float32)
    z_dst = jax.random.normal(keys[1], (B, C), jnp.float32)

    # Deterministic stand-ins for nn.Dropout (training mode, pre-scaled).
    keep_src = (jax.random.bernoulli(keys[2], 1.0 - dropout_p, (B, C))
                .astype(jnp.float32) / (1.0 - dropout_p))
    keep_dst = (jax.random.bernoulli(keys[3], 1.0 - dropout_p, (B, C))
                .astype(jnp.float32) / (1.0 - dropout_p))

    def w(k, shape, scale=0.1):
        return scale * jax.random.normal(k, shape, jnp.float32)

    params = dict(
        w_src=w(keys[4], (C, C)), b_src=w(keys[5], (C,)),     # lin_src (x @ W + b)
        w_dst=w(keys[6], (C, C)), b_dst=w(keys[7], (C,)),     # lin_dst
        w_fin=w(keys[8], (C,)), b_fin=w(keys[9], (1,)),       # lin_final (C -> 1)
    )

    out = link_predictor(params, z_src, z_dst, keep_src, keep_dst, tile_b=tile_b)
    jax.block_until_ready(out)

    ref = _reference(params, z_src, z_dst, keep_src, keep_dst)
    assert out.shape == (B, 1)
    assert bool(jnp.all(jnp.isfinite(out)))
    assert bool(jnp.allclose(out, ref, atol=1e-5, rtol=1e-5))
    print("KERNEL_OK")
</pallas_src>

<mosaic_0001>
module attributes {stable_mosaic.version = 11 : i64} {
  func.func @_link_predictor_kernel(%arg0: i32, %arg1: memref<32x64xf32, #tpu.memory_space<vmem>>, %arg2: memref<32x64xf32, #tpu.memory_space<vmem>>, %arg3: memref<64x32xf32, #tpu.memory_space<vmem>>, %arg4: memref<1x32xf32, #tpu.memory_space<vmem>>, %arg5: memref<32x1xf32, #tpu.memory_space<vmem>>, %arg6: memref<1x1xf32, #tpu.memory_space<vmem>>, %arg7: memref<32x1xf32, #tpu.memory_space<vmem>>) attributes {dimension_semantics = [#tpu.dimension_semantics<parallel>], iteration_bounds = array<i64: 2>, scalar_prefetch = 0 : i64, scratch_operands = 0 : i64, tpu.core_type = #tpu.core_type<tc>, window_params = [{transform_indices = @transform_0, window_bounds = array<i64: 32, 64>}, {transform_indices = @transform_1, window_bounds = array<i64: 32, 64>}, {pipeline_mode = #tpu.pipeline_mode<synchronous>, transform_indices = @transform_2, window_bounds = array<i64: 64, 32>}, {pipeline_mode = #tpu.pipeline_mode<synchronous>, transform_indices = @transform_3, window_bounds = array<i64: 1, 32>}, {pipeline_mode = #tpu.pipeline_mode<synchronous>, transform_indices = @transform_4, window_bounds = array<i64: 32, 1>}, {pipeline_mode = #tpu.pipeline_mode<synchronous>, transform_indices = @transform_5, window_bounds = array<i64: 1, 1>}, {transform_indices = @transform_6, window_bounds = array<i64: 32, 1>}]} {
    %c0 = arith.constant 0 : index
    %c0_0 = arith.constant 0 : index
    %0 = vector.load %arg1[%c0, %c0_0] : memref<32x64xf32, #tpu.memory_space<vmem>>, vector<32x64xf32>
    %c0_1 = arith.constant 0 : index
    %c0_2 = arith.constant 0 : index
    %1 = vector.load %arg2[%c0_1, %c0_2] : memref<32x64xf32, #tpu.memory_space<vmem>>, vector<32x64xf32>
    %2 = arith.mulf %0, %1 : vector<32x64xf32>
    %c0_3 = arith.constant 0 : index
    %c0_4 = arith.constant 0 : index
    %3 = vector.load %arg3[%c0_3, %c0_4] : memref<64x32xf32, #tpu.memory_space<vmem>>, vector<64x32xf32>
    %cst = arith.constant dense<0.000000e+00> : vector<32x32xf32>
    %4 = tpu.matmul %2, %3, %cst {dimension_numbers = #tpu.dot_dimension_numbers<[1], [0], [0], [1], [0, 0, 1, 1], [], []>} : vector<32x64xf32>, vector<64x32xf32>, vector<32x32xf32> -> vector<32x32xf32>
    %c0_5 = arith.constant 0 : index
    %c0_6 = arith.constant 0 : index
    %5 = vector.load %arg4[%c0_5, %c0_6] : memref<1x32xf32, #tpu.memory_space<vmem>>, vector<1x32xf32>
    %6 = vector.broadcast %5 : vector<1x32xf32> to vector<32x32xf32>
    %7 = arith.addf %4, %6 : vector<32x32xf32>
    %8 = math.tanh %7 : vector<32x32xf32>
    %c0_7 = arith.constant 0 : index
    %c0_8 = arith.constant 0 : index
    %9 = vector.load %arg5[%c0_7, %c0_8] : memref<32x1xf32, #tpu.memory_space<vmem>>, vector<32x1xf32>
    %cst_9 = arith.constant dense<0.000000e+00> : vector<32x1xf32>
    %10 = tpu.matmul %8, %9, %cst_9 {dimension_numbers = #tpu.dot_dimension_numbers<[1], [0], [0], [1], [0, 0, 1, 1], [], []>} : vector<32x32xf32>, vector<32x1xf32>, vector<32x1xf32> -> vector<32x1xf32>
    %c0_10 = arith.constant 0 : index
    %c0_11 = arith.constant 0 : index
    %11 = vector.load %arg6[%c0_10, %c0_11] : memref<1x1xf32, #tpu.memory_space<vmem>>, vector<1x1xf32>
    %12 = vector.broadcast %11 : vector<1x1xf32> to vector<32x1xf32>
    %13 = arith.addf %10, %12 : vector<32x1xf32>
    %c0_12 = arith.constant 0 : index
    %c0_13 = arith.constant 0 : index
    %14 = vector.load %arg7[%c0_12, %c0_13] : memref<32x1xf32, #tpu.memory_space<vmem>>, vector<32x1xf32>
    tpu.vector_store %arg7[%c0_12, %c0_13], %13 {strides = array<i32>} : memref<32x1xf32, #tpu.memory_space<vmem>>, vector<32x1xf32>,
    return
  }
  func.func @transform_0(%arg0: i32) -> (i32, i32) {
    %c0_i32 = arith.constant 0 : i32
    %c0_i32_0 = arith.constant 0 : i32
    return %arg0, %c0_i32 : i32, i32
  }
  func.func @transform_1(%arg0: i32) -> (i32, i32) {
    %c0_i32 = arith.constant 0 : i32
    %c0_i32_0 = arith.constant 0 : i32
    return %arg0, %c0_i32 : i32, i32
  }
  func.func @transform_2(%arg0: i32) -> (i32, i32) {
    %c0_i32 = arith.constant 0 : i32
    %c0_i32_0 = arith.constant 0 : i32
    %c0_i32_1 = arith.constant 0 : i32
    return %c0_i32, %c0_i32_0 : i32, i32
  }
  func.func @transform_3(%arg0: i32) -> (i32, i32) {
    %c0_i32 = arith.constant 0 : i32
    %c0_i32_0 = arith.constant 0 : i32
    %c0_i32_1 = arith.constant 0 : i32
    return %c0_i32, %c0_i32_0 : i32, i32
  }
  func.func @transform_4(%arg0: i32) -> (i32, i32) {
    %c0_i32 = arith.constant 0 : i32
    %c0_i32_0 = arith.constant 0 : i32
    %c0_i32_1 = arith.constant 0 : i32
    return %c0_i32, %c0_i32_0 : i32, i32
  }
  func.func @transform_5(%arg0: i32) -> (i32, i32) {
    %c0_i32 = arith.constant 0 : i32
    %c0_i32_0 = arith.constant 0 : i32
    %c0_i32_1 = arith.constant 0 : i32
    return %c0_i32, %c0_i32_0 : i32, i32
  }
  func.func @transform_6(%arg0: i32) -> (i32, i32) {
    %c0_i32 = arith.constant 0 : i32
    %c0_i32_0 = arith.constant 0 : i32
    return %arg0, %c0_i32 : i32, i32
  }
}

</mosaic_0001>

<llo_original>
// kernel: tpu_custom_call.1
$region0: #{tpu_custom_call.1}
  #allocation0 [shape = 'u32[]', space=smem, size = 0x4, offset = 0x4, fixed_abs, tag = 'smem constant byte address 0x4 - core index']
  #allocation1 [shape = 'u32[144,128]{1,0:T(1,128)}', space=vmem, size = 0x12000, scoped, tag = 'internal scratch']
  #allocation2 [shape = 'f32[1,1]{1,0:T(1,128)S(1)}', space=vmem, size = 0x200, scoped, tag = 'scoped memory for tpu_custom_call.1']
  %s0 = inlined_call_operand.vmem [shape: f32[64,64], index: 0, kind: input, shape index: {}]
  %s1 = inlined_call_operand.vmem [shape: f32[64,64], index: 1, kind: input, shape index: {}]
  %s2 = inlined_call_operand.vmem [shape: f32[64,32], index: 2, kind: input, shape index: {}]
  %s3 = inlined_call_operand.vmem [shape: f32[1,32], index: 3, kind: input, shape index: {}]
  %s4 = inlined_call_operand.vmem [shape: f32[32,1], index: 4, kind: input, shape index: {}]
  %s5 = inlined_call_operand.<no memory space> [shape: f32[1,1], index: 5, kind: input, shape index: {}]
  %s6 = inlined_call_operand.vmem [shape: f32[64,1], index: 6, kind: output, shape index: {}]
  %s7 = sld [smem:[#allocation0]]
  $region57: #{tpu_custom_call.1} parent=0
    _
  %s9 = ssub.s32 1, %s7
  %s10 = scalar_select 0, %s9, %s7
  %v11 = vstv %s5
  %12 = vst [vmem:[#allocation2] sm:$0x1] %v11
  loop: start=0, step=1, limit=4
  $region2: #{tpu_custom_call.1} parent=0 // loop_pre_header
    _
  $region3: #{tpu_custom_call.1} parent=0 // loop_header
    %s14 = sphi 0, %s18
    %p15 = scmp.ge.s32.totalorder %s14, 4
    %s24 = sphi 0, %s26
    %s27 = sphi 0, %s24
    %s28 = sphi 0, %s27
    %s44 = sphi 0, %s28
    %s50 = sphi 0, %s52
    %s53 = sphi 0, %s50
    %s54 = sphi 0, %s53
    %s70 = sphi 0, %s54
    %s74 = sphi 0, %s74
    %s76 = sphi 0, %s74
    %s77 = sphi 0, %s76
    %s91 = sphi 0, %s77
    %s95 = sphi 0, %s95
    %s97 = sphi 0, %s95
    %s98 = sphi 0, %s97
    %s112 = sphi 0, %s98
    %s116 = sphi 0, %s116
    %s118 = sphi 0, %s116
    %s119 = sphi 0, %s118
    %s133 = sphi 0, %s119
    %s137 = sphi 0, %s137
    %s139 = sphi 0, %s137
    %s140 = sphi 0, %s139
    %s154 = sphi 0, %s140
    %s160 = sphi 0, %s162
    %s163 = sphi 0, %s160
    %s164 = sphi 0, %s163
    %s180 = sphi 0, %s164
  $region4: #{tpu_custom_call.1} parent=0 // loop_header_branch
    %17 = sbr.rel (%p15) target = $region8
  $region5: #{tpu_custom_call.1} parent=0 // loop_body
    %s19 = ssub.s32 %s14, 1
    %s20 = ssub.s32 %s14, 2
    %s21 = sadd.s32 %s14, 1
    %s22 = ssub.s32 %s14, %s21
    %p23 = scmp.eq.s32.totalorder %s22, 0
    %s25 = sadd.s32 %s24, 1
    %s26 = scalar_select %p23, %s24, %s25
    %p29 = pneg %p23
    %p30 = scmp.eq.s32.totalorder %s14, 1
    %p31 = por %p29, %p30
    %p32 = scmp.ne.s32.totalorder %s24, %s27
    %p33 = scmp.eq.s32.totalorder %s14, 0
    %p34 = por %p32, %p33
    %p35 = scmp.ne.s32.totalorder %s24, %s27
    %p36 = scmp.eq.s32.totalorder %s19, 1
    %p37 = por %p35, %p36
    %p38 = scmp.ne.s32.totalorder %s27, %s28
    %p39 = scmp.eq.s32.totalorder %s19, 0
    %p40 = por %p38, %p39
    %p41 = scmp.ne.s32.totalorder %s27, %s28
    %p42 = scmp.eq.s32.totalorder %s20, 1
    %p43 = por %p41, %p42
    %p45 = scmp.ne.s32.totalorder %s28, %s44
    %p46 = scmp.eq.s32.totalorder %s20, 0
    %p47 = por %p45, %p46
    %s48 = ssub.s32 %s14, %s21
    %p49 = scmp.eq.s32.totalorder %s48, 0
    %s51 = sadd.s32 %s50, 1
    %s52 = scalar_select %p49, %s50, %s51
    %p55 = pneg %p49
    %p56 = scmp.eq.s32.totalorder %s14, 1
    %p57 = por %p55, %p56
    %p58 = scmp.ne.s32.totalorder %s50, %s53
    %p59 = scmp.eq.s32.totalorder %s14, 0
    %p60 = por %p58, %p59
    %p61 = scmp.ne.s32.totalorder %s50, %s53
    %p62 = scmp.eq.s32.totalorder %s19, 1
    %p63 = por %p61, %p62
    %p64 = scmp.ne.s32.totalorder %s53, %s54
    %p65 = scmp.eq.s32.totalorder %s19, 0
    %p66 = por %p64, %p65
    %p67 = scmp.ne.s32.totalorder %s53, %s54
    %p68 = scmp.eq.s32.totalorder %s20, 1
    %p69 = por %p67, %p68
    %p71 = scmp.ne.s32.totalorder %s54, %s70
    %p72 = scmp.eq.s32.totalorder %s20, 0
    %p73 = por %p71, %p72
    %s75 = sadd.s32 %s74, 1
    %p78 = scmp.eq.s32.totalorder %s14, 1
    %p79 = scmp.ne.s32.totalorder %s74, %s76
    %p80 = scmp.eq.s32.totalorder %s14, 0
    %p81 = por %p79, %p80
    %p82 = scmp.ne.s32.totalorder %s74, %s76
    %p83 = scmp.eq.s32.totalorder %s19, 1
    %p84 = por %p82, %p83
    %p85 = scmp.ne.s32.totalorder %s76, %s77
    %p86 = scmp.eq.s32.totalorder %s19, 0
    %p87 = por %p85, %p86
    %p88 = scmp.ne.s32.totalorder %s76, %s77
    %p89 = scmp.eq.s32.totalorder %s20, 1
    %p90 = por %p88, %p89
    %p92 = scmp.ne.s32.totalorder %s77, %s91
    %p93 = scmp.eq.s32.totalorder %s20, 0
    %p94 = por %p92, %p93
    %s96 = sadd.s32 %s95, 1
    %p99 = scmp.eq.s32.totalorder %s14, 1
    %p100 = scmp.ne.s32.totalorder %s95, %s97
    %p101 = scmp.eq.s32.totalorder %s14, 0
    %p102 = por %p100, %p101
    %p103 = scmp.ne.s32.totalorder %s95, %s97
    %p104 = scmp.eq.s32.totalorder %s19, 1
    %p105 = por %p103, %p104
    %p106 = scmp.ne.s32.totalorder %s97, %s98
    %p107 = scmp.eq.s32.totalorder %s19, 0
    %p108 = por %p106, %p107
    %p109 = scmp.ne.s32.totalorder %s97, %s98
    %p110 = scmp.eq.s32.totalorder %s20, 1
    %p111 = por %p109, %p110
    %p113 = scmp.ne.s32.totalorder %s98, %s112
    %p114 = scmp.eq.s32.totalorder %s20, 0
    %p115 = por %p113, %p114
    %s117 = sadd.s32 %s116, 1
    %p120 = scmp.eq.s32.totalorder %s14, 1
    %p121 = scmp.ne.s32.totalorder %s116, %s118
    %p122 = scmp.eq.s32.totalorder %s14, 0
    %p123 = por %p121, %p122
    %p124 = scmp.ne.s32.totalorder %s116, %s118
    %p125 = scmp.eq.s32.totalorder %s19, 1
    %p126 = por %p124, %p125
    %p127 = scmp.ne.s32.totalorder %s118, %s119
    %p128 = scmp.eq.s32.totalorder %s19, 0
    %p129 = por %p127, %p128
    %p130 = scmp.ne.s32.totalorder %s118, %s119
    %p131 = scmp.eq.s32.totalorder %s20, 1
    %p132 = por %p130, %p131
    %p134 = scmp.ne.s32.totalorder %s119, %s133
    %p135 = scmp.eq.s32.totalorder %s20, 0
    %p136 = por %p134, %p135
    %s138 = sadd.s32 %s137, 1
    %p141 = scmp.eq.s32.totalorder %s14, 1
    %p142 = scmp.ne.s32.totalorder %s137, %s139
    %p143 = scmp.eq.s32.totalorder %s14, 0
    %p144 = por %p142, %p143
    %p145 = scmp.ne.s32.totalorder %s137, %s139
    %p146 = scmp.eq.s32.totalorder %s19, 1
    %p147 = por %p145, %p146
    %p148 = scmp.ne.s32.totalorder %s139, %s140
    %p149 = scmp.eq.s32.totalorder %s19, 0
    %p150 = por %p148, %p149
    %p151 = scmp.ne.s32.totalorder %s139, %s140
    %p152 = scmp.eq.s32.totalorder %s20, 1
    %p153 = por %p151, %p152
    %p155 = scmp.ne.s32.totalorder %s140, %s154
    %p156 = scmp.eq.s32.totalorder %s20, 0
    %p157 = por %p155, %p156
    %s158 = ssub.s32 %s14, %s21
    %p159 = scmp.eq.s32.totalorder %s158, 0
    %s161 = sadd.s32 %s160, 1
    %s162 = scalar_select %p159, %s160, %s161
    %p165 = pneg %p159
    %p166 = scmp.eq.s32.totalorder %s14, 1
    %p167 = por %p165, %p166
    %p168 = scmp.ne.s32.totalorder %s160, %s163
    %p169 = scmp.eq.s32.totalorder %s14, 0
    %p170 = por %p168, %p169
    %p171 = scmp.ne.s32.totalorder %s160, %s163
    %p172 = scmp.eq.s32.totalorder %s19, 1
    %p173 = por %p171, %p172
    %p174 = scmp.ne.s32.totalorder %s163, %s164
    %p175 = scmp.eq.s32.totalorder %s19, 0
    %p176 = por %p174, %p175
    %p177 = scmp.ne.s32.totalorder %s163, %s164
    %p178 = scmp.eq.s32.totalorder %s20, 1
    %p179 = por %p177, %p178
    %p181 = scmp.ne.s32.totalorder %s164, %s180
    %p182 = scmp.eq.s32.totalorder %s20, 0
    %p183 = por %p181, %p182
    %p184 = scmp.le.s32.totalorder 1, %s14
    %p185 = scmp.lt.s32.totalorder %s14, 3
    %p186 = pnand %p184, %p185
    %p187 = pneg %p186
    // Predicated region
    $region9: #{tpu_custom_call.1} parent=5 // pred_check
      _
    $region10: #{tpu_custom_call.1} parent=5 // pred_check_branch
      %189 = sbr.rel (%p186) target = $region12
    $region11: #{tpu_custom_call.1} parent=5 // pred_region
      %s190 = ssub.s32 %s14, 1
      // Predicated region
      $region13: #{tpu_custom_call.1} parent=11 // pred_check
        %p191 = pneg %p87
      $region14: #{tpu_custom_call.1} parent=11 // pred_check_branch
        %193 = sbr.rel (%p191) target = $region16
      $region15: #{tpu_custom_call.1} parent=11 // pred_region
        _
      $region16: #{tpu_custom_call.1} parent=11 // pred_fallthru
        _
      // Predicated region
      $region17: #{tpu_custom_call.1} parent=11 // pred_check
        %p194 = pneg %p108
      $region18: #{tpu_custom_call.1} parent=11 // pred_check_branch
        %196 = sbr.rel (%p194) target = $region20
      $region19: #{tpu_custom_call.1} parent=11 // pred_region
        _
      $region20: #{tpu_custom_call.1} parent=11 // pred_fallthru
        _
      // Predicated region
      $region21: #{tpu_custom_call.1} parent=11 // pred_check
        %p197 = pneg %p129
      $region22: #{tpu_custom_call.1} parent=11 // pred_check_branch
        %199 = sbr.rel (%p197) target = $region24
      $region23: #{tpu_custom_call.1} parent=11 // pred_region
        _
      $region24: #{tpu_custom_call.1} parent=11 // pred_fallthru
        _
      // Predicated region
      $region25: #{tpu_custom_call.1} parent=11 // pred_check
        %p200 = pneg %p150
      $region26: #{tpu_custom_call.1} parent=11 // pred_check_branch
        %202 = sbr.rel (%p200) target = $region28
      $region27: #{tpu_custom_call.1} parent=11 // pred_region
        _
      $region28: #{tpu_custom_call.1} parent=11 // pred_fallthru
        _
    $region12: #{tpu_custom_call.1} parent=5 // pred_fallthru
      _
    %p203 = scmp.lt.s32.totalorder %s14, 2
    // Predicated region
    $region29: #{tpu_custom_call.1} parent=5 // pred_check
      %p204 = pneg %p203
    $region30: #{tpu_custom_call.1} parent=5 // pred_check_branch
      %206 = sbr.rel (%p204) target = $region32
    $region31: #{tpu_custom_call.1} parent=5 // pred_region
      // Predicated region
      $region33: #{tpu_custom_call.1} parent=31 // pred_check
        %p207 = pneg %p34
      $region34: #{tpu_custom_call.1} parent=31 // pred_check_branch
        %209 = sbr.rel (%p207) target = $region36
      $region35: #{tpu_custom_call.1} parent=31 // pred_region
        %s210 = smul.u32 4, %s14
        %p211 = scmp.lt.s32.totalorder %s210, 7
        %s212 = scalar_select %p211, %s210, 7
        %s213 = smul.addr %s212, 8
        %s214 = scalar_lea.vmem %s0, %s213
        %s215 = smul.u32 4, %s14
      $region36: #{tpu_custom_call.1} parent=31 // pred_fallthru
        _
      // Predicated region
      $region37: #{tpu_custom_call.1} parent=31 // pred_check
        %p216 = pneg %p60
      $region38: #{tpu_custom_call.1} parent=31 // pred_check_branch
        %218 = sbr.rel (%p216) target = $region40
      $region39: #{tpu_custom_call.1} parent=31 // pred_region
        %s219 = smul.u32 4, %s14
        %p220 = scmp.lt.s32.totalorder %s219, 7
        %s221 = scalar_select %p220, %s219, 7
        %s222 = smul.addr %s221, 8
        %s223 = scalar_lea.vmem %s1, %s222
        %s224 = smul.u32 4, %s14
      $region40: #{tpu_custom_call.1} parent=31 // pred_fallthru
        _
    $region32: #{tpu_custom_call.1} parent=5 // pred_fallthru
      _
    %p225 = scmp.le.s32.totalorder 1, %s14
    %p226 = scmp.lt.s32.totalorder %s14, 3
    %p227 = pnand %p225, %p226
    %p228 = pneg %p227
    // Predicated region
    $region41: #{tpu_custom_call.1} parent=5 // pred_check
      _
    $region42: #{tpu_custom_call.1} parent=5 // pred_check_branch
      %230 = sbr.rel (%p227) target = $region44
    $region43: #{tpu_custom_call.1} parent=5 // pred_region
      %s231 = ssub.s32 %s14, 1
      %s232 = smul.u32 4, %s19
      %p233 = scmp.lt.s32.totalorder %s232, 7
      %s234 = scalar_select %p233, %s232, 7
      %s235 = smul.addr %s234, 8
      %s236 = scalar_lea.vmem %s0, %s235
      %p237 = pneg %p40
      %p238 = pneg %p37
      %s239 = smul.u32 4, %s19
      %p240 = scmp.lt.s32.totalorder %s239, 7
      %s241 = scalar_select %p240, %s239, 7
      %s242 = smul.addr %s241, 8
      %s243 = scalar_lea.vmem %s1, %s242
      %p244 = pneg %p66
      %p245 = pneg %p63
      %p246 = pneg %p87
      %p247 = pneg %p84
      %p248 = pneg %p108
      %p249 = pneg %p105
      %p250 = pneg %p129
      %p251 = pneg %p126
      %p252 = pneg %p150
      %p253 = pneg %p147
      %p254 = pneg %p176
      %p255 = pneg %p173
      %s256 = smul.u32 4, %s19
      %p257 = scmp.lt.s32.totalorder %s256, 7
      %s258 = scalar_select %p257, %s256, 7
      %s259 = smul.addr %s258, 8
      %s260 = scalar_lea.vmem %s6, %s259
      %s261 = smul.u32 4, %s19
      %p262 = scmp.lt.s32.totalorder %s261, 7
      %s263 = scalar_select %p262, %s261, 7
      %s264 = smul.addr %s263, 8
      %s265 = scalar_lea.vmem %s0, %s264
      %s266 = smul.u32 4, %s19
      %s267 = smul.u32 4, %s19
      %p268 = scmp.lt.s32.totalorder %s267, 7
      %s269 = scalar_select %p268, %s267, 7
      %s270 = smul.addr %s269, 8
      %s271 = scalar_lea.vmem %s1, %s270
      %s272 = smul.u32 4, %s19
      %s273 = smul.u32 4, %s19
      %p274 = scmp.lt.s32.totalorder %s273, 7
      %s275 = scalar_select %p274, %s273, 7
      %s276 = smul.addr %s275, 8
      %s277 = scalar_lea.vmem %s6, %s276
      %s278 = smul.u32 4, %s19
      %v279 = vld [vmem:[%s265] sm:$0xff]
      %v280 = vld [vmem:[%s265 + $0x8] sm:$0xff]
      %v281 = vld [vmem:[%s265 + $0x10] sm:$0xff]
      %v282 = vld [vmem:[%s265 + $0x18] sm:$0xff]
      %v283 = vld [vmem:[%s271] sm:$0xff]
      %v284 = vld [vmem:[%s271 + $0x8] sm:$0xff]
      %v285 = vld [vmem:[%s271 + $0x10] sm:$0xff]
      %v286 = vld [vmem:[%s271 + $0x18] sm:$0xff]
      %v287 = vmul.f32 %v279, %v283
      %v288 = vmul.f32 %v280, %v284
      %v289 = vmul.f32 %v281, %v285
      %v290 = vmul.f32 %v282, %v286
      %v291 = vld [vmem:[%s2] sm:$0xff]
      %v292 = vld [vmem:[%s2 + $0x8] sm:$0xff]
      %v293 = vld [vmem:[%s2 + $0x10] sm:$0xff]
      %v294 = vld [vmem:[%s2 + $0x18] sm:$0xff]
      %v295 = vld [vmem:[%s2 + $0x20] sm:$0xff]
      %v296 = vld [vmem:[%s2 + $0x28] sm:$0xff]
      %v297 = vld [vmem:[%s2 + $0x30] sm:$0xff]
      %v298 = vld [vmem:[%s2 + $0x38] sm:$0xff]
      %v299 = vld [vmem:[%s3] sm:$0x1]
      %v301 = vlaneseq
      %v302 = vshrl.u32 %v301, 7
      %v303 = vsub.s32 0, %v302
      %v304 = vrot.slane %v299, %v303
      %vm306 = vcmask 523264
      %v308 = vsel %vm306, %v287, 0
      %v311 = vsel %vm306, %v288, 0
      %v314 = vsel %vm306, %v289, 0
      %v317 = vsel %vm306, %v290, 0
      %319 = vmatprep.subr.mxu0 0.0
      %320 = vmatpush1.msra.mxu0 %v291
      %321 = vmatprep.subr.mxu0 0.0
      %322 = vmatpush1.msra.mxu0 %v292
      %323 = vmatprep.subr.mxu0 0.0
      %324 = vmatpush1.msra.mxu0 %v293
      %325 = vmatprep.subr.mxu0 0.0
      %326 = vmatpush1.msra.mxu0 %v294
      %327 = vmatprep.subr.mxu0 0.0
      %328 = vmatpush1.msra.mxu0 %v295
      %329 = vmatprep.subr.mxu0 0.0
      %330 = vmatpush1.msra.mxu0 %v296
      %331 = vmatprep.subr.mxu0 0.0
      %332 = vmatpush1.msra.mxu0 %v297
      %333 = vmatprep.subr.mxu0 0.0
      %334 = vmatpush1.msra.mxu0 %v298
      %335 = vmatprep.subr.mxu0 0.0
      %336 = vmatpush1.msra.mxu0 0.0
      %337 = vmatprep.subr.mxu0 0.0
      %338 = vmatpush1.msra.mxu0 0.0
      %339 = vmatprep.subr.mxu0 0.0
      %340 = vmatpush1.msra.mxu0 0.0
      %341 = vmatprep.subr.mxu0 0.0
      %342 = vmatpush1.msra.mxu0 0.0
      %343 = vmatprep.subr.mxu0 0.0
      %344 = vmatpush1.msra.mxu0 0.0
      %345 = vmatprep.subr.mxu0 0.0
      %346 = vmatpush1.msra.mxu0 0.0
      %347 = vmatprep.subr.mxu0 0.0
      %348 = vmatpush1.msra.mxu0 0.0
      %349 = vmatprep.subr.mxu0 0.0
      %350 = vmatpush1.msra.mxu0 0.0
      %351 = vmatprep.subr.mxu0 0.0
      %352 = vmatpush1.msra.mxu0 0.0
      %353 = vmatprep.subr.mxu0 0.0
      %354 = vmatpush1.msra.mxu0 0.0
      %355 = vmatprep.subr.mxu0 0.0
      %356 = vmatpush1.msra.mxu0 0.0
      %357 = vmatprep.subr.mxu0 0.0
      %358 = vmatpush1.msra.mxu0 0.0
      %359 = vmatprep.subr.mxu0 0.0
      %360 = vmatpush1.msra.mxu0 0.0
      %361 = vmatprep.subr.mxu0 0.0
      %362 = vmatpush1.msra.mxu0 0.0
      %363 = vmatprep.subr.mxu0 0.0
      %364 = vmatpush1.msra.mxu0 0.0
      %365 = vmatprep.subr.mxu0 0.0
      %366 = vmatpush1.msra.mxu0 0.0
      %367 = vmatprep.subr.mxu0 0.0
      %368 = vmatpush1.msra.mxu0 0.0
      %369 = vmatprep.subr.mxu0 0.0
      %370 = vmatpush1.msra.mxu0 0.0
      %371 = vmatprep.subr.mxu0 0.0
      %372 = vmatpush1.msra.mxu0 0.0
      %373 = vmatprep.subr.mxu0 0.0
      %374 = vmatpush1.msra.mxu0 0.0
      %375 = vmatprep.subr.mxu0 0.0
      %376 = vmatpush1.msra.mxu0 0.0
      %377 = vmatprep.subr.mxu0 0.0
      %378 = vmatpush1.msra.mxu0 0.0
      %379 = vmatprep.subr.mxu0 0.0
      %380 = vmatpush1.msra.mxu0 0.0
      %381 = vmatprep.subr.mxu0 0.0
      %382 = vmatpush1.msra.mxu0 0.0
      %383 = vmatprep.mubr.f32.mxu0 0.0
      %384 = vmatmul.mubr.f32.gmra.mrb[0].mxu0 %v308
      %v385 = vpop.f32.mrb[0].mxu0
      %v386 = vadd.f32 %v304, %v385
      %v387 = vpop.f32.mrb[0].mxu0
      %388 = vmatprep.mubr.f32.mxu0 0.0
      %389 = vmatmul.mubr.f32.gmra.mrb[0].mxu0 %v311
      %v390 = vpop.f32.mrb[0].mxu0
      %v391 = vadd.f32 %v304, %v390
      %v392 = vpop.f32.mrb[0].mxu0
      %393 = vmatprep.mubr.f32.mxu0 0.0
      %394 = vmatmul.mubr.f32.gmra.mrb[0].mxu0 %v314
      %v395 = vpop.f32.mrb[0].mxu0
      %v396 = vadd.f32 %v304, %v395
      %v397 = vpop.f32.mrb[0].mxu0
      %398 = vmatprep.mubr.f32.mxu0 0.0
      %399 = vmatmul.mubr.f32.gmra.mrb[0].mxu0 %v317
      %v400 = vpop.f32.mrb[0].mxu0
      %v401 = vadd.f32 %v304, %v400
      %v402 = vpop.f32.mrb[0].mxu0
      %403 = vdwg.mxu0
      %v404 = vtanh.pop %v386
      %v405 = vtanh.pop %v391
      %v406 = vtanh.pop %v396
      %v407 = vtanh.pop %v401
      %v408 = vld [vmem:[%s4] sm:$0xff]
      %v409 = vld [vmem:[%s4 + $0x8] sm:$0xff]
      %v410 = vld [vmem:[%s4 + $0x10] sm:$0xff]
      %v411 = vld [vmem:[%s4 + $0x18] sm:$0xff]
      %v412 = vld [vmem:[#allocation2] sm:$0x1]
      %v414 = vlaneseq
      %v415 = vshrl.u32 %v414, 7
      %v416 = vsub.s32 0, %v415
      %v417 = vrot.slane %v412, %v416
      %vm419 = vcmask 261120
      %v421 = vsel %vm419, %v404, 0
      %v424 = vsel %vm419, %v405, 0
      %v427 = vsel %vm419, %v406, 0
      %v430 = vsel %vm419, %v407, 0
      %432 = vmatprep.subr.mxu0 0.0
      %433 = vmatpush1.msra.mxu0 %v408
      %434 = vmatprep.subr.mxu0 0.0
      %435 = vmatpush1.msra.mxu0 %v409
      %436 = vmatprep.subr.mxu0 0.0
      %437 = vmatpush1.msra.mxu0 %v410
      %438 = vmatprep.subr.mxu0 0.0
      %439 = vmatpush1.msra.mxu0 %v411
      %440 = vmatprep.subr.mxu0 0.0
      %441 = vmatpush1.msra.mxu0 0.0
      %442 = vmatprep.subr.mxu0 0.0
      %443 = vmatpush1.msra.mxu0 0.0
      %444 = vmatprep.subr.mxu0 0.0
      %445 = vmatpush1.msra.mxu0 0.0
      %446 = vmatprep.subr.mxu0 0.0
      %447 = vmatpush1.msra.mxu0 0.0
      %448 = vmatprep.subr.mxu0 0.0
      %449 = vmatpush1.msra.mxu0 0.0
      %450 = vmatprep.subr.mxu0 0.0
      %451 = vmatpush1.msra.mxu0 0.0
      %452 = vmatprep.subr.mxu0 0.0
      %453 = vmatpush1.msra.mxu0 0.0
      %454 = vmatprep.subr.mxu0 0.0
      %455 = vmatpush1.msra.mxu0 0.0
      %456 = vmatprep.subr.mxu0 0.0
      %457 = vmatpush1.msra.mxu0 0.0
      %458 = vmatprep.subr.mxu0 0.0
      %459 = vmatpush1.msra.mxu0 0.0
      %460 = vmatprep.subr.mxu0 0.0
      %461 = vmatpush1.msra.mxu0 0.0
      %462 = vmatprep.subr.mxu0 0.0
      %463 = vmatpush1.msra.mxu0 0.0
      %464 = vmatprep.subr.mxu0 0.0
      %465 = vmatpush1.msra.mxu0 0.0
      %466 = vmatprep.subr.mxu0 0.0
      %467 = vmatpush1.msra.mxu0 0.0
      %468 = vmatprep.subr.mxu0 0.0
      %469 = vmatpush1.msra.mxu0 0.0
      %470 = vmatprep.subr.mxu0 0.0
      %471 = vmatpush1.msra.mxu0 0.0
      %472 = vmatprep.subr.mxu0 0.0
      %473 = vmatpush1.msra.mxu0 0.0
      %474 = vmatprep.subr.mxu0 0.0
      %475 = vmatpush1.msra.mxu0 0.0
      %476 = vmatprep.subr.mxu0 0.0
      %477 = vmatpush1.msra.mxu0 0.0
      %478 = vmatprep.subr.mxu0 0.0
      %479 = vmatpush1.msra.mxu0 0.0
      %480 = vmatprep.subr.mxu0 0.0
      %481 = vmatpush1.msra.mxu0 0.0
      %482 = vmatprep.subr.mxu0 0.0
      %483 = vmatpush1.msra.mxu0 0.0
      %484 = vmatprep.subr.mxu0 0.0
      %485 = vmatpush1.msra.mxu0 0.0
      %486 = vmatprep.subr.mxu0 0.0
      %487 = vmatpush1.msra.mxu0 0.0
      %488 = vmatprep.subr.mxu0 0.0
      %489 = vmatpush1.msra.mxu0 0.0
      %490 = vmatprep.subr.mxu0 0.0
      %491 = vmatpush1.msra.mxu0 0.0
      %492 = vmatprep.subr.mxu0 0.0
      %493 = vmatpush1.msra.mxu0 0.0
      %494 = vmatprep.subr.mxu0 0.0
      %495 = vmatpush1.msra.mxu0 0.0
      %496 = vmatprep.mubr.f32.mxu0 0.0
      %497 = vmatmul.mubr.f32.gmra.mrb[0].mxu0 %v421
      %v498 = vpop.f32.mrb[0].mxu0
      %v499 = vadd.f32 %v417, %v498
      %v500 = vpop.f32.mrb[0].mxu0
      %501 = vmatprep.mubr.f32.mxu0 0.0
      %502 = vmatmul.mubr.f32.gmra.mrb[0].mxu0 %v424
      %v503 = vpop.f32.mrb[0].mxu0
      %v504 = vadd.f32 %v417, %v503
      %v505 = vpop.f32.mrb[0].mxu0
      %506 = vmatprep.mubr.f32.mxu0 0.0
      %507 = vmatmul.mubr.f32.gmra.mrb[0].mxu0 %v427
      %v508 = vpop.f32.mrb[0].mxu0
      %v509 = vadd.f32 %v417, %v508
      %v510 = vpop.f32.mrb[0].mxu0
      %511 = vmatprep.mubr.f32.mxu0 0.0
      %512 = vmatmul.mubr.f32.gmra.mrb[0].mxu0 %v430
      %v513 = vpop.f32.mrb[0].mxu0
      %v514 = vadd.f32 %v417, %v513
      %v515 = vpop.f32.mrb[0].mxu0
      %516 = vdwg.mxu0
      %vm517 = vcmask 7168
      %518 = vst.msk [vmem:[%s277] sm:$0xff] %vm517, %v499
      %519 = vst.msk [vmem:[%s277 + $0x8] sm:$0xff] %vm517, %v504
      %520 = vst.msk [vmem:[%s277 + $0x10] sm:$0xff] %vm517, %v509
      %521 = vst.msk [vmem:[%s277 + $0x18] sm:$0xff] %vm517, %v514
      %s522 = smul.u32 4, %s19
      %p523 = scmp.lt.s32.totalorder %s522, 7
      %s524 = scalar_select %p523, %s522, 7
      %s525 = smul.addr %s524, 8
      %s526 = scalar_lea.vmem %s6, %s525
      // Predicated region
      $region45: #{tpu_custom_call.1} parent=43 // pred_check
        %p527 = pneg %p173
      $region46: #{tpu_custom_call.1} parent=43 // pred_check_branch
        %529 = sbr.rel (%p527) target = $region48
      $region47: #{tpu_custom_call.1} parent=43 // pred_region
        %s530 = smul.u32 4, %s19
      $region48: #{tpu_custom_call.1} parent=43 // pred_fallthru
        _
    $region44: #{tpu_custom_call.1} parent=5 // pred_fallthru
      _
    %p531 = scmp.le.s32.totalorder 2, %s14
    // Predicated region
    $region49: #{tpu_custom_call.1} parent=5 // pred_check
      %p532 = pneg %p531
    $region50: #{tpu_custom_call.1} parent=5 // pred_check_branch
      %534 = sbr.rel (%p532) target = $region52
    $region51: #{tpu_custom_call.1} parent=5 // pred_region
      %s535 = ssub.s32 %s14, 2
      // Predicated region
      $region53: #{tpu_custom_call.1} parent=51 // pred_check
        %p536 = pneg %p179
      $region54: #{tpu_custom_call.1} parent=51 // pred_check_branch
        %538 = sbr.rel (%p536) target = $region56
      $region55: #{tpu_custom_call.1} parent=51 // pred_region
        %s539 = smul.u32 4, %s20
        %p540 = scmp.lt.s32.totalorder %s539, 7
        %s541 = scalar_select %p540, %s539, 7
        %s542 = smul.addr %s541, 8
        %s543 = scalar_lea.vmem %s6, %s542
      $region56: #{tpu_custom_call.1} parent=51 // pred_fallthru
        _
    $region52: #{tpu_custom_call.1} parent=5 // pred_fallthru
      _
  $region6: #{tpu_custom_call.1} parent=0 // loop_footer
    %s18 = sadd.s32 1, %s14
  $region7: #{tpu_custom_call.1} parent=0 // loop_footer_branch
    %13 = sbr.rel target = $region3
  $region8: #{tpu_custom_call.1} parent=0 // loop_exit
    _

</llo_original>
